<compile_context>
chip_gen: v5e
topology: v5e:2x2
jax: 0.10.0
libtpu: 0.0.40
codegen_flags: <defaults>
</compile_context>

<pallas_src>
import functools

import jax
import jax.numpy as jnp
from jax.experimental import pallas as pl
from jax.experimental.pallas import tpu as pltpu


# (input-parity, coarse-shift) groups reached by a 3-tap stencil (d in {-1,0,1})
# after the 2x phase split; the same list applies to rows and to columns.
_PHASE_GROUPS = ((0, 0), (0, 1), (1, -1), (1, 0))


def _tap_offset(out_parity, group):
    """d (dy or dx) in {-1,0,1} mapping output parity onto `group`, else None."""
    parity, shift = group
    d = 2 * shift + parity - out_parity
    return d if d in (-1, 0, 1) else None


def _basic_block_kernel(x_ref, w_ref, b_ref, o_ref, xx_ref, patch_ref, *,
                        cin_pad, cout, h2, w2, margin):
    """Fused conv3x3(pad=1) + bias + ReLU + maxpool2x2 for B images.

    x_ref:     (4*cin_pad, B*P)  phase-split input; row = phase*cin_pad + ci,
                                 lane = b*P + i*w2 + j   (P = h2*w2)
    w_ref:     (4*cout, 16*cin_pad)  phase/tap-packed conv weights
    b_ref:     (cout, 1)         conv bias
    o_ref:     (cout, B*P)       pooled output, lane = b*P + i*w2 + j
    xx_ref:    (4*cin_pad, B*P + 2*margin)  staging buffer (margins are never
                                 read unmasked, so they are never zeroed)
    patch_ref: (16*cin_pad, B*P) coarse-grid im2col patch (K x M)
    """
    P = h2 * w2
    Q = x_ref.shape[1]                      # B*P

    # Stage the block once (one dense store) so every +-(w2+1) lane shift below
    # is a plain static slice of a margined buffer.
    xx_ref[:, margin:margin + Q] = x_ref[...]

    # Coarse-grid edge masks, hoisted and materialized once at tap shape.
    pos = jax.lax.broadcasted_iota(jnp.int32, (cin_pad, Q), 1) % P
    col = pos % w2
    row_ok = {-1: pos >= w2, 0: None, 1: pos < (P - w2)}
    col_ok = {-1: col > 0, 0: None, 1: col < (w2 - 1)}

    # Build the (16*cin_pad, Q) patch: one shifted slice load + optional mask +
    # one dense, 8-sublane-aligned store per (input-phase, coarse-shift) group.
    for gv, (row_par, s) in enumerate(_PHASE_GROUPS):
        for gh, (col_par, t) in enumerate(_PHASE_GROUPS):
            g = gv * 4 + gh
            phase = row_par * 2 + col_par
            start = margin + s * w2 + t
            slab = xx_ref[phase * cin_pad:(phase + 1) * cin_pad,
                          start:start + Q]
            ok = row_ok[s]
            if col_ok[t] is not None:
                ok = col_ok[t] if ok is None else (ok & col_ok[t])
            if ok is not None:
                slab = jnp.where(ok, slab, 0.0)        # conv zero-padding
            patch_ref[g * cin_pad:(g + 1) * cin_pad, :] = slab

    # One MXU pass: all four conv-output phases at once.
    acc = jnp.dot(w_ref[...], patch_ref[...],
                  preferred_element_type=jnp.float32)   # (4*cout, Q)

    # MaxPool2d(2,2) == elementwise max over the four output phases (bias and
    # ReLU commute with the max), on 8-sublane-aligned slices; then one
    # lane-dense store of (cout, B*P).
    m = jnp.maximum(jnp.maximum(acc[0 * cout:1 * cout], acc[1 * cout:2 * cout]),
                    jnp.maximum(acc[2 * cout:3 * cout], acc[3 * cout:4 * cout]))
    o_ref[...] = jnp.maximum(m + b_ref[...], 0.0).astype(o_ref.dtype)


def _pick_batch(n, p, cin_pad, max_patch_bytes=4 << 20):
    """Images per grid step: divides N, VMEM-capped, prefers >=2 grid steps
    (v7x megacore) and a lane-dense (multiple-of-128) slab width, then size."""
    per_image = 16 * cin_pad * p * 4
    cap = max(1, max_patch_bytes // per_image)
    divisors = [b for b in range(1, n + 1) if n % b == 0 and b <= cap]

    def score(b):
        return ((n // b >= 2) or n == 1, (b * p) % 128 == 0, b)

    return max(divisors, key=score)


def basic_block_forward(x_nchw, weight, bias, *, use_bf16_matmul=False):
    """BasicBlock forward: Conv2d(3x3, s=1, p=1) + ReLU + MaxPool2d(2, 2).

    x_nchw: (N, Cin, H, W) float32
    weight: (Cout, Cin, 3, 3) float32  (PyTorch conv weight layout)
    bias:   (Cout,) float32
    returns (N, Cout, H//2, W//2) in x_nchw.dtype

    use_bf16_matmul: cast MXU operands (patch + weights) to bfloat16 with f32
      accumulation -- the right choice on v6e/v7x when a tolerance looser than
      the f32 1e-4 self-check is acceptable.
    """
    N, Cin, H, W = x_nchw.shape
    Cout = weight.shape[0]
    assert H % 2 == 0 and W % 2 == 0, "MaxPool2d(2,2) path assumes even H, W"
    H2, W2, P = H // 2, W // 2, (H // 2) * (W // 2)
    CIN_PAD = ((Cin + 7) // 8) * 8
    MARGIN = 128                               # lane-aligned halo, > W2 + 1

    in_dtype = jnp.bfloat16 if use_bf16_matmul else x_nchw.dtype

    # --- layout prep: small one-shot XLA ops on the input / weights ---------
    # Space-to-depth: (N,Cin,H,W) -> (4 phases, CIN_PAD, N*P), lane = b*P+i*W2+j.
    x6 = x_nchw.reshape(N, Cin, H2, 2, W2, 2)
    xp = jnp.transpose(x6, (3, 5, 1, 0, 2, 4)).reshape(4, Cin, N * P)
    xp = jnp.pad(xp, ((0, 0), (0, CIN_PAD - Cin), (0, 0)))
    x2d = xp.reshape(4 * CIN_PAD, N * P).astype(in_dtype)

    # Phase/tap-packed weights (4*Cout, 16*CIN_PAD); columns for padded input
    # channels and unreachable (phase, shift) groups stay zero.
    wbig = jnp.zeros((4 * Cout, 16 * CIN_PAD), jnp.float32)
    for a in (0, 1):
        for c in (0, 1):
            q = a * 2 + c
            for gv, vgrp in enumerate(_PHASE_GROUPS):
                dy = _tap_offset(a, vgrp)
                if dy is None:
                    continue
                for gh, hgrp in enumerate(_PHASE_GROUPS):
                    dx = _tap_offset(c, hgrp)
                    if dx is None:
                        continue
                    g = gv * 4 + gh
                    wbig = wbig.at[q * Cout:(q + 1) * Cout,
                                   g * CIN_PAD:g * CIN_PAD + Cin].set(
                                       weight[:, :, dy + 1, dx + 1])
    wbig = wbig.astype(in_dtype)
    b2 = bias.reshape(Cout, 1).astype(jnp.float32)

    B = _pick_batch(N, P, CIN_PAD)
    G = N // B
    Q = B * P
    # TODO(synk): ragged slab widths would need masked output stores.
    assert (Q % 128 == 0) or (B == N), "per-step slab B*PHW should be 128-lane dense"

    kernel = functools.partial(_basic_block_kernel, cin_pad=CIN_PAD, cout=Cout,
                               h2=H2, w2=W2, margin=MARGIN)

    out2d = pl.pallas_call(
        kernel,
        out_shape=jax.ShapeDtypeStruct((Cout, N * P), x_nchw.dtype),
        grid_spec=pltpu.PrefetchScalarGridSpec(
            num_scalar_prefetch=0,
            grid=(G,),
            in_specs=[
                pl.BlockSpec((4 * CIN_PAD, Q), lambda g: (0, g)),
                pl.BlockSpec((4 * Cout, 16 * CIN_PAD), lambda g: (0, 0)),
                pl.BlockSpec((Cout, 1), lambda g: (0, 0)),
            ],
            out_specs=pl.BlockSpec((Cout, Q), lambda g: (0, g)),
            scratch_shapes=[
                pltpu.VMEM((4 * CIN_PAD, Q + 2 * MARGIN), in_dtype),  # staging
                pltpu.VMEM((16 * CIN_PAD, Q), in_dtype),              # patch
            ],
        ),
        compiler_params=pltpu.CompilerParams(
            dimension_semantics=("parallel",)),
    )(x2d, wbig, b2)

    # Undo the kernel's (co, b, i, j) lane order -> NCHW (tiny output reshape).
    return jnp.transpose(out2d.reshape(Cout, N, H2, W2), (1, 0, 2, 3))


def _reference_forward(x_nchw, weight, bias):
    """Pure-JAX reference (mirrors PyTorch) for the correctness check."""
    y = jax.lax.conv_general_dilated(
        x_nchw, weight, window_strides=(1, 1), padding=((1, 1), (1, 1)),
        dimension_numbers=("NCHW", "OIHW", "NCHW"))
    y = y + bias.reshape(1, -1, 1, 1)
    y = jnp.maximum(y, 0.0)
    y = jax.lax.reduce_window(
        y, -jnp.inf, jax.lax.max,
        window_dimensions=(1, 1, 2, 2), window_strides=(1, 1, 2, 2),
        padding="VALID")
    return y


if __name__ == "__main__":
    key = jax.random.PRNGKey(0)
    k_x, k_w, k_b = jax.random.split(key, 3)

    N, Cin, Cout, H, W = 8, 4, 8, 16, 16
    x = jax.random.normal(k_x, (N, Cin, H, W), dtype=jnp.float32)
    weight = jax.random.normal(k_w, (Cout, Cin, 3, 3), dtype=jnp.float32) * 0.1
    bias = jax.random.normal(k_b, (Cout,), dtype=jnp.float32) * 0.01

    ref = jax.block_until_ready(_reference_forward(x, weight, bias))

    out = jax.block_until_ready(basic_block_forward(x, weight, bias))
    assert out.shape == (N, Cout, H // 2, W // 2), out.shape
    assert jnp.allclose(out, ref, atol=1e-4, rtol=1e-4), \
        float(jnp.max(jnp.abs(out - ref)))

    # bf16 MXU-operand variant (v6e/v7x recommendation): looser tolerance.
    out_bf16 = jax.block_until_ready(
        basic_block_forward(x, weight, bias, use_bf16_matmul=True))
    assert jnp.allclose(out_bf16, ref, atol=1e-1, rtol=1e-1), \
        float(jnp.max(jnp.abs(out_bf16 - ref)))

    print("KERNEL_OK")
</pallas_src>

<mosaic_0001>
module attributes {stable_mosaic.version = 11 : i64} {
  func.func @_basic_block_kernel(%arg0: i32, %arg1: memref<32x256xf32, #tpu.memory_space<vmem>>, %arg2: memref<32x128xf32, #tpu.memory_space<vmem>>, %arg3: memref<8x1xf32, #tpu.memory_space<vmem>>, %arg4: memref<8x256xf32, #tpu.memory_space<vmem>>, %arg5: memref<32x512xf32, #tpu.memory_space<vmem>>, %arg6: memref<128x256xf32, #tpu.memory_space<vmem>>) attributes {dimension_semantics = [#tpu.dimension_semantics<parallel>], iteration_bounds = array<i64: 2>, scalar_prefetch = 0 : i64, scratch_operands = 2 : i64, tpu.core_type = #tpu.core_type<tc>, window_params = [{transform_indices = @transform_0, window_bounds = array<i64: 32, 256>}, {pipeline_mode = #tpu.pipeline_mode<synchronous>, transform_indices = @transform_1, window_bounds = array<i64: 32, 128>}, {pipeline_mode = #tpu.pipeline_mode<synchronous>, transform_indices = @transform_2, window_bounds = array<i64: 8, 1>}, {transform_indices = @transform_3, window_bounds = array<i64: 8, 256>}]} {
    %c0 = arith.constant 0 : index
    %c0_0 = arith.constant 0 : index
    %0 = vector.load %arg1[%c0, %c0_0] : memref<32x256xf32, #tpu.memory_space<vmem>>, vector<32x256xf32>
    %c0_1 = arith.constant 0 : index
    %c128 = arith.constant 128 : index
    %1 = vector.load %arg5[%c0_1, %c128] : memref<32x512xf32, #tpu.memory_space<vmem>>, vector<32x256xf32>
    tpu.vector_store %arg5[%c0_1, %c128], %0 {strides = array<i32>} : memref<32x512xf32, #tpu.memory_space<vmem>>, vector<32x256xf32>,
    %2 = tpu.iota {dimensions = array<i32: 1>} : vector<8x256xi32>
    %c64_i32 = arith.constant 64 : i32
    %c0_i32 = arith.constant 0 : i32
    %3 = arith.cmpi eq, %c64_i32, %c0_i32 : i32
    %c1_i32 = arith.constant 1 : i32
    %4 = arith.select %3, %c1_i32, %c64_i32 : i32
    %5 = vector.broadcast %4 : i32 to vector<8x256xi32>
    %6 = arith.remsi %2, %5 : vector<8x256xi32>
    %c0_i32_2 = arith.constant 0 : i32
    %7 = vector.broadcast %c0_i32_2 : i32 to vector<8x256xi32>
    %8 = arith.cmpi ne, %6, %7 : vector<8x256xi32>
    %c0_i32_3 = arith.constant 0 : i32
    %9 = vector.broadcast %c0_i32_3 : i32 to vector<8x256xi32>
    %10 = arith.cmpi slt, %6, %9 : vector<8x256xi32>
    %c0_i32_4 = arith.constant 0 : i32
    %11 = arith.cmpi slt, %4, %c0_i32_4 : i32
    %12 = vector.broadcast %11 : i1 to vector<8x256xi1>
    %13 = vector.broadcast %12 : vector<8x256xi1> to vector<8x256xi1>
    %14 = arith.xori %10, %13 : vector<8x256xi1>
    %15 = arith.andi %14, %8 : vector<8x256xi1>
    %16 = vector.broadcast %4 : i32 to vector<8x256xi32>
    %17 = arith.addi %6, %16 : vector<8x256xi32>
    %18 = arith.select %15, %17, %6 : vector<8x256xi1>, vector<8x256xi32>
    %c8_i32 = arith.constant 8 : i32
    %c0_i32_5 = arith.constant 0 : i32
    %19 = arith.cmpi eq, %c8_i32, %c0_i32_5 : i32
    %c1_i32_6 = arith.constant 1 : i32
    %20 = arith.select %19, %c1_i32_6, %c8_i32 : i32
    %21 = vector.broadcast %20 : i32 to vector<8x256xi32>
    %22 = arith.remsi %18, %21 : vector<8x256xi32>
    %c0_i32_7 = arith.constant 0 : i32
    %23 = vector.broadcast %c0_i32_7 : i32 to vector<8x256xi32>
    %24 = arith.cmpi ne, %22, %23 : vector<8x256xi32>
    %c0_i32_8 = arith.constant 0 : i32
    %25 = vector.broadcast %c0_i32_8 : i32 to vector<8x256xi32>
    %26 = arith.cmpi slt, %22, %25 : vector<8x256xi32>
    %c0_i32_9 = arith.constant 0 : i32
    %27 = arith.cmpi slt, %20, %c0_i32_9 : i32
    %28 = vector.broadcast %27 : i1 to vector<8x256xi1>
    %29 = vector.broadcast %28 : vector<8x256xi1> to vector<8x256xi1>
    %30 = arith.xori %26, %29 : vector<8x256xi1>
    %31 = arith.andi %30, %24 : vector<8x256xi1>
    %32 = vector.broadcast %20 : i32 to vector<8x256xi32>
    %33 = arith.addi %22, %32 : vector<8x256xi32>
    %34 = arith.select %31, %33, %22 : vector<8x256xi1>, vector<8x256xi32>
    %c8_i32_10 = arith.constant 8 : i32
    %35 = vector.broadcast %c8_i32_10 : i32 to vector<8x256xi32>
    %36 = arith.cmpi sge, %18, %35 : vector<8x256xi32>
    %c56_i32 = arith.constant 56 : i32
    %37 = vector.broadcast %c56_i32 : i32 to vector<8x256xi32>
    %38 = arith.cmpi slt, %18, %37 : vector<8x256xi32>
    %c0_i32_11 = arith.constant 0 : i32
    %39 = vector.broadcast %c0_i32_11 : i32 to vector<8x256xi32>
    %40 = arith.cmpi sgt, %34, %39 : vector<8x256xi32>
    %c7_i32 = arith.constant 7 : i32
    %41 = vector.broadcast %c7_i32 : i32 to vector<8x256xi32>
    %42 = arith.cmpi slt, %34, %41 : vector<8x256xi32>
    %c0_12 = arith.constant 0 : index
    %c128_13 = arith.constant 128 : index
    %43 = vector.load %arg5[%c0_12, %c128_13] : memref<32x512xf32, #tpu.memory_space<vmem>>, vector<8x256xf32>
    %c0_14 = arith.constant 0 : index
    %c0_15 = arith.constant 0 : index
    %44 = vector.load %arg6[%c0_14, %c0_15] : memref<128x256xf32, #tpu.memory_space<vmem>>, vector<8x256xf32>
    tpu.vector_store %arg6[%c0_14, %c0_15], %43 {strides = array<i32>} : memref<128x256xf32, #tpu.memory_space<vmem>>, vector<8x256xf32>,
    %c0_16 = arith.constant 0 : index
    %c129 = arith.constant 129 : index
    %45 = vector.load %arg5[%c0_16, %c129] : memref<32x512xf32, #tpu.memory_space<vmem>>, vector<8x256xf32>
    %cst = arith.constant 0.000000e+00 : f32
    %46 = vector.broadcast %cst : f32 to vector<8x256xf32>
    %47 = arith.select %42, %45, %46 : vector<8x256xi1>, vector<8x256xf32>
    %c8 = arith.constant 8 : index
    %c0_17 = arith.constant 0 : index
    %48 = vector.load %arg6[%c8, %c0_17] : memref<128x256xf32, #tpu.memory_space<vmem>>, vector<8x256xf32>
    tpu.vector_store %arg6[%c8, %c0_17], %47 {strides = array<i32>} : memref<128x256xf32, #tpu.memory_space<vmem>>, vector<8x256xf32>,
    %c8_18 = arith.constant 8 : index
    %c127 = arith.constant 127 : index
    %49 = vector.load %arg5[%c8_18, %c127] : memref<32x512xf32, #tpu.memory_space<vmem>>, vector<8x256xf32>
    %cst_19 = arith.constant 0.000000e+00 : f32
    %50 = vector.broadcast %cst_19 : f32 to vector<8x256xf32>
    %51 = arith.select %40, %49, %50 : vector<8x256xi1>, vector<8x256xf32>
    %c16 = arith.constant 16 : index
    %c0_20 = arith.constant 0 : index
    %52 = vector.load %arg6[%c16, %c0_20] : memref<128x256xf32, #tpu.memory_space<vmem>>, vector<8x256xf32>
    tpu.vector_store %arg6[%c16, %c0_20], %51 {strides = array<i32>} : memref<128x256xf32, #tpu.memory_space<vmem>>, vector<8x256xf32>,
    %c8_21 = arith.constant 8 : index
    %c128_22 = arith.constant 128 : index
    %53 = vector.load %arg5[%c8_21, %c128_22] : memref<32x512xf32, #tpu.memory_space<vmem>>, vector<8x256xf32>
    %c24 = arith.constant 24 : index
    %c0_23 = arith.constant 0 : index
    %54 = vector.load %arg6[%c24, %c0_23] : memref<128x256xf32, #tpu.memory_space<vmem>>, vector<8x256xf32>
    tpu.vector_store %arg6[%c24, %c0_23], %53 {strides = array<i32>} : memref<128x256xf32, #tpu.memory_space<vmem>>, vector<8x256xf32>,
    %c0_24 = arith.constant 0 : index
    %c136 = arith.constant 136 : index
    %55 = vector.load %arg5[%c0_24, %c136] : memref<32x512xf32, #tpu.memory_space<vmem>>, vector<8x256xf32>
    %cst_25 = arith.constant 0.000000e+00 : f32
    %56 = vector.broadcast %cst_25 : f32 to vector<8x256xf32>
    %57 = arith.select %38, %55, %56 : vector<8x256xi1>, vector<8x256xf32>
    %c32 = arith.constant 32 : index
    %c0_26 = arith.constant 0 : index
    %58 = vector.load %arg6[%c32, %c0_26] : memref<128x256xf32, #tpu.memory_space<vmem>>, vector<8x256xf32>
    tpu.vector_store %arg6[%c32, %c0_26], %57 {strides = array<i32>} : memref<128x256xf32, #tpu.memory_space<vmem>>, vector<8x256xf32>,
    %c0_27 = arith.constant 0 : index
    %c137 = arith.constant 137 : index
    %59 = vector.load %arg5[%c0_27, %c137] : memref<32x512xf32, #tpu.memory_space<vmem>>, vector<8x256xf32>
    %60 = arith.andi %38, %42 : vector<8x256xi1>
    %cst_28 = arith.constant 0.000000e+00 : f32
    %61 = vector.broadcast %cst_28 : f32 to vector<8x256xf32>
    %62 = arith.select %60, %59, %61 : vector<8x256xi1>, vector<8x256xf32>
    %c40 = arith.constant 40 : index
    %c0_29 = arith.constant 0 : index
    %63 = vector.load %arg6[%c40, %c0_29] : memref<128x256xf32, #tpu.memory_space<vmem>>, vector<8x256xf32>
    tpu.vector_store %arg6[%c40, %c0_29], %62 {strides = array<i32>} : memref<128x256xf32, #tpu.memory_space<vmem>>, vector<8x256xf32>,
    %c8_30 = arith.constant 8 : index
    %c135 = arith.constant 135 : index
    %64 = vector.load %arg5[%c8_30, %c135] : memref<32x512xf32, #tpu.memory_space<vmem>>, vector<8x256xf32>
    %65 = arith.andi %38, %40 : vector<8x256xi1>
    %cst_31 = arith.constant 0.000000e+00 : f32
    %66 = vector.broadcast %cst_31 : f32 to vector<8x256xf32>
    %67 = arith.select %65, %64, %66 : vector<8x256xi1>, vector<8x256xf32>
    %c48 = arith.constant 48 : index
    %c0_32 = arith.constant 0 : index
    %68 = vector.load %arg6[%c48, %c0_32] : memref<128x256xf32, #tpu.memory_space<vmem>>, vector<8x256xf32>
    tpu.vector_store %arg6[%c48, %c0_32], %67 {strides = array<i32>} : memref<128x256xf32, #tpu.memory_space<vmem>>, vector<8x256xf32>,
    %c8_33 = arith.constant 8 : index
    %c136_34 = arith.constant 136 : index
    %69 = vector.load %arg5[%c8_33, %c136_34] : memref<32x512xf32, #tpu.memory_space<vmem>>, vector<8x256xf32>
    %cst_35 = arith.constant 0.000000e+00 : f32
    %70 = vector.broadcast %cst_35 : f32 to vector<8x256xf32>
    %71 = arith.select %38, %69, %70 : vector<8x256xi1>, vector<8x256xf32>
    %c56 = arith.constant 56 : index
    %c0_36 = arith.constant 0 : index
    %72 = vector.load %arg6[%c56, %c0_36] : memref<128x256xf32, #tpu.memory_space<vmem>>, vector<8x256xf32>
    tpu.vector_store %arg6[%c56, %c0_36], %71 {strides = array<i32>} : memref<128x256xf32, #tpu.memory_space<vmem>>, vector<8x256xf32>,
    %c16_37 = arith.constant 16 : index
    %c120 = arith.constant 120 : index
    %73 = vector.load %arg5[%c16_37, %c120] : memref<32x512xf32, #tpu.memory_space<vmem>>, vector<8x256xf32>
    %cst_38 = arith.constant 0.000000e+00 : f32
    %74 = vector.broadcast %cst_38 : f32 to vector<8x256xf32>
    %75 = arith.select %36, %73, %74 : vector<8x256xi1>, vector<8x256xf32>
    %c64 = arith.constant 64 : index
    %c0_39 = arith.constant 0 : index
    %76 = vector.load %arg6[%c64, %c0_39] : memref<128x256xf32, #tpu.memory_space<vmem>>, vector<8x256xf32>
    tpu.vector_store %arg6[%c64, %c0_39], %75 {strides = array<i32>} : memref<128x256xf32, #tpu.memory_space<vmem>>, vector<8x256xf32>,
    %c16_40 = arith.constant 16 : index
    %c121 = arith.constant 121 : index
    %77 = vector.load %arg5[%c16_40, %c121] : memref<32x512xf32, #tpu.memory_space<vmem>>, vector<8x256xf32>
    %78 = arith.andi %36, %42 : vector<8x256xi1>
    %cst_41 = arith.constant 0.000000e+00 : f32
    %79 = vector.broadcast %cst_41 : f32 to vector<8x256xf32>
    %80 = arith.select %78, %77, %79 : vector<8x256xi1>, vector<8x256xf32>
    %c72 = arith.constant 72 : index
    %c0_42 = arith.constant 0 : index
    %81 = vector.load %arg6[%c72, %c0_42] : memref<128x256xf32, #tpu.memory_space<vmem>>, vector<8x256xf32>
    tpu.vector_store %arg6[%c72, %c0_42], %80 {strides = array<i32>} : memref<128x256xf32, #tpu.memory_space<vmem>>, vector<8x256xf32>,
    %c24_43 = arith.constant 24 : index
    %c119 = arith.constant 119 : index
    %82 = vector.load %arg5[%c24_43, %c119] : memref<32x512xf32, #tpu.memory_space<vmem>>, vector<8x256xf32>
    %83 = arith.andi %36, %40 : vector<8x256xi1>
    %cst_44 = arith.constant 0.000000e+00 : f32
    %84 = vector.broadcast %cst_44 : f32 to vector<8x256xf32>
    %85 = arith.select %83, %82, %84 : vector<8x256xi1>, vector<8x256xf32>
    %c80 = arith.constant 80 : index
    %c0_45 = arith.constant 0 : index
    %86 = vector.load %arg6[%c80, %c0_45] : memref<128x256xf32, #tpu.memory_space<vmem>>, vector<8x256xf32>
    tpu.vector_store %arg6[%c80, %c0_45], %85 {strides = array<i32>} : memref<128x256xf32, #tpu.memory_space<vmem>>, vector<8x256xf32>,
    %c24_46 = arith.constant 24 : index
    %c120_47 = arith.constant 120 : index
    %87 = vector.load %arg5[%c24_46, %c120_47] : memref<32x512xf32, #tpu.memory_space<vmem>>, vector<8x256xf32>
    %cst_48 = arith.constant 0.000000e+00 : f32
    %88 = vector.broadcast %cst_48 : f32 to vector<8x256xf32>
    %89 = arith.select %36, %87, %88 : vector<8x256xi1>, vector<8x256xf32>
    %c88 = arith.constant 88 : index
    %c0_49 = arith.constant 0 : index
    %90 = vector.load %arg6[%c88, %c0_49] : memref<128x256xf32, #tpu.memory_space<vmem>>, vector<8x256xf32>
    tpu.vector_store %arg6[%c88, %c0_49], %89 {strides = array<i32>} : memref<128x256xf32, #tpu.memory_space<vmem>>, vector<8x256xf32>,
    %c16_50 = arith.constant 16 : index
    %c128_51 = arith.constant 128 : index
    %91 = vector.load %arg5[%c16_50, %c128_51] : memref<32x512xf32, #tpu.memory_space<vmem>>, vector<8x256xf32>
    %c96 = arith.constant 96 : index
    %c0_52 = arith.constant 0 : index
    %92 = vector.load %arg6[%c96, %c0_52] : memref<128x256xf32, #tpu.memory_space<vmem>>, vector<8x256xf32>
    tpu.vector_store %arg6[%c96, %c0_52], %91 {strides = array<i32>} : memref<128x256xf32, #tpu.memory_space<vmem>>, vector<8x256xf32>,
    %c16_53 = arith.constant 16 : index
    %c129_54 = arith.constant 129 : index
    %93 = vector.load %arg5[%c16_53, %c129_54] : memref<32x512xf32, #tpu.memory_space<vmem>>, vector<8x256xf32>
    %cst_55 = arith.constant 0.000000e+00 : f32
    %94 = vector.broadcast %cst_55 : f32 to vector<8x256xf32>
    %95 = arith.select %42, %93, %94 : vector<8x256xi1>, vector<8x256xf32>
    %c104 = arith.constant 104 : index
    %c0_56 = arith.constant 0 : index
    %96 = vector.load %arg6[%c104, %c0_56] : memref<128x256xf32, #tpu.memory_space<vmem>>, vector<8x256xf32>
    tpu.vector_store %arg6[%c104, %c0_56], %95 {strides = array<i32>} : memref<128x256xf32, #tpu.memory_space<vmem>>, vector<8x256xf32>,
    %c24_57 = arith.constant 24 : index
    %c127_58 = arith.constant 127 : index
    %97 = vector.load %arg5[%c24_57, %c127_58] : memref<32x512xf32, #tpu.memory_space<vmem>>, vector<8x256xf32>
    %cst_59 = arith.constant 0.000000e+00 : f32
    %98 = vector.broadcast %cst_59 : f32 to vector<8x256xf32>
    %99 = arith.select %40, %97, %98 : vector<8x256xi1>, vector<8x256xf32>
    %c112 = arith.constant 112 : index
    %c0_60 = arith.constant 0 : index
    %100 = vector.load %arg6[%c112, %c0_60] : memref<128x256xf32, #tpu.memory_space<vmem>>, vector<8x256xf32>
    tpu.vector_store %arg6[%c112, %c0_60], %99 {strides = array<i32>} : memref<128x256xf32, #tpu.memory_space<vmem>>, vector<8x256xf32>,
    %c24_61 = arith.constant 24 : index
    %c128_62 = arith.constant 128 : index
    %101 = vector.load %arg5[%c24_61, %c128_62] : memref<32x512xf32, #tpu.memory_space<vmem>>, vector<8x256xf32>
    %c120_63 = arith.constant 120 : index
    %c0_64 = arith.constant 0 : index
    %102 = vector.load %arg6[%c120_63, %c0_64] : memref<128x256xf32, #tpu.memory_space<vmem>>, vector<8x256xf32>
    tpu.vector_store %arg6[%c120_63, %c0_64], %101 {strides = array<i32>} : memref<128x256xf32, #tpu.memory_space<vmem>>, vector<8x256xf32>,
    %c0_65 = arith.constant 0 : index
    %c0_66 = arith.constant 0 : index
    %103 = vector.load %arg2[%c0_65, %c0_66] : memref<32x128xf32, #tpu.memory_space<vmem>>, vector<32x128xf32>
    %c0_67 = arith.constant 0 : index
    %c0_68 = arith.constant 0 : index
    %104 = vector.load %arg6[%c0_67, %c0_68] : memref<128x256xf32, #tpu.memory_space<vmem>>, vector<128x256xf32>
    %cst_69 = arith.constant dense<0.000000e+00> : vector<32x256xf32>
    %105 = tpu.matmul %103, %104, %cst_69 {dimension_numbers = #tpu.dot_dimension_numbers<[1], [0], [0], [1], [0, 0, 1, 1], [], []>} : vector<32x128xf32>, vector<128x256xf32>, vector<32x256xf32> -> vector<32x256xf32>
    %106 = vector.extract_strided_slice %105 {offsets = [0, 0], sizes = [8, 256], strides = [1, 1]} : vector<32x256xf32> to vector<8x256xf32>
    %107 = vector.extract_strided_slice %105 {offsets = [8, 0], sizes = [8, 256], strides = [1, 1]} : vector<32x256xf32> to vector<8x256xf32>
    %108 = arith.maximumf %106, %107 : vector<8x256xf32>
    %109 = vector.extract_strided_slice %105 {offsets = [16, 0], sizes = [8, 256], strides = [1, 1]} : vector<32x256xf32> to vector<8x256xf32>
    %110 = vector.extract_strided_slice %105 {offsets = [24, 0], sizes = [8, 256], strides = [1, 1]} : vector<32x256xf32> to vector<8x256xf32>
    %111 = arith.maximumf %109, %110 : vector<8x256xf32>
    %112 = arith.maximumf %108, %111 : vector<8x256xf32>
    %c0_70 = arith.constant 0 : index
    %c0_71 = arith.constant 0 : index
    %113 = vector.load %arg3[%c0_70, %c0_71] : memref<8x1xf32, #tpu.memory_space<vmem>>, vector<8x1xf32>
    %114 = vector.broadcast %113 : vector<8x1xf32> to vector<8x256xf32>
    %115 = arith.addf %112, %114 : vector<8x256xf32>
    %cst_72 = arith.constant 0.000000e+00 : f32
    %116 = vector.broadcast %cst_72 : f32 to vector<8x256xf32>
    %117 = arith.maximumf %115, %116 : vector<8x256xf32>
    %c0_73 = arith.constant 0 : index
    %c0_74 = arith.constant 0 : index
    %118 = vector.load %arg4[%c0_73, %c0_74] : memref<8x256xf32, #tpu.memory_space<vmem>>, vector<8x256xf32>
    tpu.vector_store %arg4[%c0_73, %c0_74], %117 {strides = array<i32>} : memref<8x256xf32, #tpu.memory_space<vmem>>, vector<8x256xf32>,
    return
  }
  func.func @transform_0(%arg0: i32) -> (i32, i32) {
    %c0_i32 = arith.constant 0 : i32
    %c0_i32_0 = arith.constant 0 : i32
    return %c0_i32, %arg0 : i32, i32
  }
  func.func @transform_1(%arg0: i32) -> (i32, i32) {
    %c0_i32 = arith.constant 0 : i32
    %c0_i32_0 = arith.constant 0 : i32
    %c0_i32_1 = arith.constant 0 : i32
    return %c0_i32, %c0_i32_0 : i32, i32
  }
  func.func @transform_2(%arg0: i32) -> (i32, i32) {
    %c0_i32 = arith.constant 0 : i32
    %c0_i32_0 = arith.constant 0 : i32
    %c0_i32_1 = arith.constant 0 : i32
    return %c0_i32, %c0_i32_0 : i32, i32
  }
  func.func @transform_3(%arg0: i32) -> (i32, i32) {
    %c0_i32 = arith.constant 0 : i32
    %c0_i32_0 = arith.constant 0 : i32
    return %c0_i32, %arg0 : i32, i32
  }
}

</mosaic_0001>

<llo_original>
// kernel: tpu_custom_call.1
$region0: #{tpu_custom_call.1}
  #allocation0 [shape = 'u32[]', space=smem, size = 0x4, offset = 0x4, fixed_abs, tag = 'smem constant byte address 0x4 - core index']
  #allocation1 [shape = 'u32[72,128]{1,0:T(1,128)}', space=vmem, size = 0x9000, scoped, tag = 'internal scratch']
  #allocation2 [shape = 'f32[32,512]{1,0:T(8,128)}', space=vmem, size = 0x10000, scoped, tag = 'scratch operand']
  #allocation3 [shape = 'f32[128,256]{1,0:T(8,128)}', space=vmem, size = 0x20000, scoped, tag = 'scratch operand']
  %s0 = inlined_call_operand.hbm [shape: f32[32,512], index: 0, kind: input, shape index: {}]
  %s1 = inlined_call_operand.hbm [shape: f32[32,128], index: 1, kind: input, shape index: {}]
  %s2 = inlined_call_operand.vmem [shape: f32[8,1], index: 2, kind: input, shape index: {}]
  %s3 = inlined_call_operand.hbm [shape: f32[8,512], index: 3, kind: output, shape index: {}]
  %s4 = sld [smem:[#allocation0]]
  $region53: #{tpu_custom_call.1} parent=0
    _
  %s6 = ssub.s32 1, %s4
  %s7 = scalar_select 0, %s6, %s4
  $region1: #{tpu_custom_call.1} parent=0
    #allocation4 [shape = 'u8[65536]{0}', space=vmem, size = 0x10000, scoped, tag = 'input window, operand 0']
    #allocation5 [shape = 's32[2]{0}', space=sflag, size = 0x8, scoped, tag = 'scoped memory for tpu_custom_call.1']
    #allocation6 [shape = 's32[2]{0}', space=sflag, size = 0x8, scoped, tag = 'scoped memory for tpu_custom_call.1']
    #allocation7 [shape = 'u8[16384]{0}', space=vmem, size = 0x4000, scoped, tag = 'input window, operand 1, single buffered']
    #allocation8 [shape = 's32[1]{0}', space=sflag, size = 0x4, scoped, tag = 'scoped memory for tpu_custom_call.1']
    #allocation9 [shape = 'u8[16384]{0}', space=vmem, size = 0x4000, scoped, tag = 'output window, operand 0']
    %8 = vsyncpa [#allocation5], 0
    %s9 = scalar_lea.sflag [#allocation5], 1
    %10 = vsyncpa %s9, 0
    %11 = vsyncpa [#allocation8], 0
    %12 = vsyncpa [#allocation6], 0
    %s13 = scalar_lea.sflag [#allocation6], 1
    %14 = vsyncpa %s13, 0
    loop: start=0, step=1, limit=4
    $region2: #{tpu_custom_call.1} parent=1 // loop_pre_header
      _
    $region3: #{tpu_custom_call.1} parent=1 // loop_header
      %s16 = sphi 0, %s20
      %p17 = scmp.ge.s32.totalorder %s16, 4
      %s26 = sphi 0, %s28
      %s29 = sphi 0, %s26
      %s30 = sphi 0, %s29
      %s46 = sphi 0, %s30
      %s50 = sphi 0, %s50
      %s52 = sphi 0, %s50
      %s53 = sphi 0, %s52
      %s67 = sphi 0, %s53
      %s71 = sphi 0, %s71
      %s73 = sphi 0, %s71
      %s74 = sphi 0, %s73
      %s88 = sphi 0, %s74
      %s94 = sphi 0, %s96
      %s97 = sphi 0, %s94
      %s98 = sphi 0, %s97
      %s114 = sphi 0, %s98
    $region4: #{tpu_custom_call.1} parent=1 // loop_header_branch
      %19 = sbr.rel (%p17) target = $region8
    $region5: #{tpu_custom_call.1} parent=1 // loop_body
      %s21 = ssub.s32 %s16, 1
      %s22 = ssub.s32 %s16, 2
      %s23 = sadd.s32 %s16, 1
      %s24 = ssub.s32 %s16, %s23
      %p25 = scmp.eq.s32.totalorder %s24, 0
      %s27 = sadd.s32 %s26, 1
      %s28 = scalar_select %p25, %s26, %s27
      %p31 = pneg %p25
      %p32 = scmp.eq.s32.totalorder %s16, 1
      %p33 = por %p31, %p32
      %p34 = scmp.ne.s32.totalorder %s26, %s29
      %p35 = scmp.eq.s32.totalorder %s16, 0
      %p36 = por %p34, %p35
      %p37 = scmp.ne.s32.totalorder %s26, %s29
      %p38 = scmp.eq.s32.totalorder %s21, 1
      %p39 = por %p37, %p38
      %p40 = scmp.ne.s32.totalorder %s29, %s30
      %p41 = scmp.eq.s32.totalorder %s21, 0
      %p42 = por %p40, %p41
      %p43 = scmp.ne.s32.totalorder %s29, %s30
      %p44 = scmp.eq.s32.totalorder %s22, 1
      %p45 = por %p43, %p44
      %p47 = scmp.ne.s32.totalorder %s30, %s46
      %p48 = scmp.eq.s32.totalorder %s22, 0
      %p49 = por %p47, %p48
      %s51 = sadd.s32 %s50, 1
      %p54 = scmp.eq.s32.totalorder %s16, 1
      %p55 = scmp.ne.s32.totalorder %s50, %s52
      %p56 = scmp.eq.s32.totalorder %s16, 0
      %p57 = por %p55, %p56
      %p58 = scmp.ne.s32.totalorder %s50, %s52
      %p59 = scmp.eq.s32.totalorder %s21, 1
      %p60 = por %p58, %p59
      %p61 = scmp.ne.s32.totalorder %s52, %s53
      %p62 = scmp.eq.s32.totalorder %s21, 0
      %p63 = por %p61, %p62
      %p64 = scmp.ne.s32.totalorder %s52, %s53
      %p65 = scmp.eq.s32.totalorder %s22, 1
      %p66 = por %p64, %p65
      %p68 = scmp.ne.s32.totalorder %s53, %s67
      %p69 = scmp.eq.s32.totalorder %s22, 0
      %p70 = por %p68, %p69
      %s72 = sadd.s32 %s71, 1
      %p75 = scmp.eq.s32.totalorder %s16, 1
      %p76 = scmp.ne.s32.totalorder %s71, %s73
      %p77 = scmp.eq.s32.totalorder %s16, 0
      %p78 = por %p76, %p77
      %p79 = scmp.ne.s32.totalorder %s71, %s73
      %p80 = scmp.eq.s32.totalorder %s21, 1
      %p81 = por %p79, %p80
      %p82 = scmp.ne.s32.totalorder %s73, %s74
      %p83 = scmp.eq.s32.totalorder %s21, 0
      %p84 = por %p82, %p83
      %p85 = scmp.ne.s32.totalorder %s73, %s74
      %p86 = scmp.eq.s32.totalorder %s22, 1
      %p87 = por %p85, %p86
      %p89 = scmp.ne.s32.totalorder %s74, %s88
      %p90 = scmp.eq.s32.totalorder %s22, 0
      %p91 = por %p89, %p90
      %s92 = ssub.s32 %s16, %s23
      %p93 = scmp.eq.s32.totalorder %s92, 0
      %s95 = sadd.s32 %s94, 1
      %s96 = scalar_select %p93, %s94, %s95
      %p99 = pneg %p93
      %p100 = scmp.eq.s32.totalorder %s16, 1
      %p101 = por %p99, %p100
      %p102 = scmp.ne.s32.totalorder %s94, %s97
      %p103 = scmp.eq.s32.totalorder %s16, 0
      %p104 = por %p102, %p103
      %p105 = scmp.ne.s32.totalorder %s94, %s97
      %p106 = scmp.eq.s32.totalorder %s21, 1
      %p107 = por %p105, %p106
      %p108 = scmp.ne.s32.totalorder %s97, %s98
      %p109 = scmp.eq.s32.totalorder %s21, 0
      %p110 = por %p108, %p109
      %p111 = scmp.ne.s32.totalorder %s97, %s98
      %p112 = scmp.eq.s32.totalorder %s22, 1
      %p113 = por %p111, %p112
      %p115 = scmp.ne.s32.totalorder %s98, %s114
      %p116 = scmp.eq.s32.totalorder %s22, 0
      %p117 = por %p115, %p116
      %p118 = scmp.le.s32.totalorder 1, %s16
      %p119 = scmp.lt.s32.totalorder %s16, 3
      %p120 = pnand %p118, %p119
      %p121 = pneg %p120
      // Predicated region
      $region9: #{tpu_custom_call.1} parent=5 // pred_check
        _
      $region10: #{tpu_custom_call.1} parent=5 // pred_check_branch
        %123 = sbr.rel (%p120) target = $region12
      $region11: #{tpu_custom_call.1} parent=5 // pred_region
        %s124 = ssub.s32 %s16, 1
        // Predicated region
        $region13: #{tpu_custom_call.1} parent=11 // pred_check
          %p125 = pneg %p63
        $region14: #{tpu_custom_call.1} parent=11 // pred_check_branch
          %127 = sbr.rel (%p125) target = $region16
        $region15: #{tpu_custom_call.1} parent=11 // pred_region
          %129 = vsyncadd [#allocation8], 0
          %s130 = sshll.u32 %s1, 4
          %s131 = int_to_ptr.hbm [resolvable:$true] %s130
          %s132 = sshll.u32 [#allocation7], 4
          %s133 = int_to_ptr.vmem [resolvable:$true] %s132
          %138 = dma.hbm_to_vmem [thread:$0]  %s131, 512, %s133, [#allocation8], 128, 128, 8
        $region16: #{tpu_custom_call.1} parent=11 // pred_fallthru
          _
        // Predicated region
        $region17: #{tpu_custom_call.1} parent=11 // pred_check
          %p139 = pneg %p84
        $region18: #{tpu_custom_call.1} parent=11 // pred_check_branch
          %141 = sbr.rel (%p139) target = $region20
        $region19: #{tpu_custom_call.1} parent=11 // pred_region
          _
        $region20: #{tpu_custom_call.1} parent=11 // pred_fallthru
          _
      $region12: #{tpu_custom_call.1} parent=5 // pred_fallthru
        _
      %p142 = scmp.lt.s32.totalorder %s16, 2
      // Predicated region
      $region21: #{tpu_custom_call.1} parent=5 // pred_check
        %p143 = pneg %p142
      $region22: #{tpu_custom_call.1} parent=5 // pred_check_branch
        %145 = sbr.rel (%p143) target = $region24
      $region23: #{tpu_custom_call.1} parent=5 // pred_region
        // Predicated region
        $region25: #{tpu_custom_call.1} parent=23 // pred_check
          %p146 = pneg %p36
        $region26: #{tpu_custom_call.1} parent=23 // pred_check_branch
          %148 = sbr.rel (%p146) target = $region28
        $region27: #{tpu_custom_call.1} parent=23 // pred_region
          %s149 = sand.u32 %s26, 1
          %s150 = scalar_lea.sflag [#allocation5], %s149
          %s151 = sand.u32 %s26, 1
          %s152 = smul.addr %s151, 64
          %s153 = scalar_lea.vmem [#allocation4], %s152
          %s154 = smul.u32 2, %s16
          %156 = vsyncadd %s150, 0
          %s157 = smul.addr %s154, 8
          %s158 = scalar_lea.hbm %s0, %s157
          %s159 = sshll.u32 %s158, 4
          %s160 = int_to_ptr.hbm [resolvable:$true] %s159
          %s161 = sshll.u32 %s153, 4
          %s162 = int_to_ptr.vmem [resolvable:$true] %s161
          %167 = dma.hbm_to_vmem [thread:$0]  %s160, 1024, %s162, %s150, 512, 256, 16
        $region28: #{tpu_custom_call.1} parent=23 // pred_fallthru
          _
      $region24: #{tpu_custom_call.1} parent=5 // pred_fallthru
        _
      %p168 = scmp.le.s32.totalorder 1, %s16
      %p169 = scmp.lt.s32.totalorder %s16, 3
      %p170 = pnand %p168, %p169
      %p171 = pneg %p170
      // Predicated region
      $region29: #{tpu_custom_call.1} parent=5 // pred_check
        _
      $region30: #{tpu_custom_call.1} parent=5 // pred_check_branch
        %173 = sbr.rel (%p170) target = $region32
      $region31: #{tpu_custom_call.1} parent=5 // pred_region
        %s174 = ssub.s32 %s16, 1
        %s175 = sand.u32 %s29, 1
        %s176 = scalar_lea.sflag [#allocation5], %s175
        %s177 = sand.u32 %s29, 1
        %s178 = smul.addr %s177, 64
        %s179 = scalar_lea.vmem [#allocation4], %s178
        // Predicated region
        $region33: #{tpu_custom_call.1} parent=31 // pred_check
          %p180 = pneg %p42
        $region34: #{tpu_custom_call.1} parent=31 // pred_check_branch
          %182 = sbr.rel (%p180) target = $region36
        $region35: #{tpu_custom_call.1} parent=31 // pred_region
          %184 = dma.done %s176, 1024
        $region36: #{tpu_custom_call.1} parent=31 // pred_fallthru
          _
        // Predicated region
        $region37: #{tpu_custom_call.1} parent=31 // pred_check
          %p185 = pneg %p63
        $region38: #{tpu_custom_call.1} parent=31 // pred_check_branch
          %187 = sbr.rel (%p185) target = $region40
        $region39: #{tpu_custom_call.1} parent=31 // pred_region
          %189 = dma.done [#allocation8], 512
        $region40: #{tpu_custom_call.1} parent=31 // pred_fallthru
          _
        %s190 = sand.u32 %s29, 1
        %s191 = scalar_lea.sflag [#allocation5], %s190
        %s192 = sand.u32 %s29, 1
        %s193 = smul.addr %s192, 64
        %s194 = scalar_lea.vmem [#allocation4], %s193
        %p195 = pneg %p42
        %p196 = pneg %p39
        %p197 = pneg %p63
        %p198 = pneg %p60
        %p199 = pneg %p84
        %p200 = pneg %p81
        %p201 = pneg %p110
        %p202 = pneg %p107
        %s203 = sand.u32 %s97, 1
        %s204 = scalar_lea.sflag [#allocation6], %s203
        %s205 = sand.u32 %s97, 1
        %s206 = smul.addr %s205, 16
        %s207 = scalar_lea.vmem [#allocation9], %s206
        %s208 = smul.u32 2, %s21
        %s209 = smul.u32 2, %s21
        %v210 = vld [vmem:[%s179] sm:$0xff]
        %v211 = vld [vmem:[%s179 + $0x8] sm:$0xff]
        %v212 = vld [vmem:[%s179 + $0x10] sm:$0xff]
        %v213 = vld [vmem:[%s179 + $0x18] sm:$0xff]
        %v214 = vld [vmem:[%s179 + $0x20] sm:$0xff]
        %v215 = vld [vmem:[%s179 + $0x28] sm:$0xff]
        %v216 = vld [vmem:[%s179 + $0x30] sm:$0xff]
        %v217 = vld [vmem:[%s179 + $0x38] sm:$0xff]
        %218 = vst [vmem:[#allocation2 + $0x8] sm:$0xff] %v210
        %219 = vst [vmem:[#allocation2 + $0x10] sm:$0xff] %v211
        %220 = vst [vmem:[#allocation2 + $0x28] sm:$0xff] %v212
        %221 = vst [vmem:[#allocation2 + $0x30] sm:$0xff] %v213
        %222 = vst [vmem:[#allocation2 + $0x48] sm:$0xff] %v214
        %223 = vst [vmem:[#allocation2 + $0x50] sm:$0xff] %v215
        %224 = vst [vmem:[#allocation2 + $0x68] sm:$0xff] %v216
        %225 = vst [vmem:[#allocation2 + $0x70] sm:$0xff] %v217
        %v226 = vlaneseq
        %v227 = vand.u32 %v226, 127
        %v228 = vadd.s32 %v227, 128
        %vm229 = vcmp.lt.s32.totalorder %v227, 0
        %v230 = vsub.s32 0, %v227
        %v231 = vsel %vm229, %v230, %v227
        %v232 = vshrl.u32 %v231, 6
        %v233 = vand.u32 %v231, 63
        %v234 = vsub.s32 0, %v233
        %v235 = vsel %vm229, %v234, %v233
        %vm236 = vcmp.lt.s32.totalorder %v228, 0
        %v237 = vsub.s32 0, %v228
        %v238 = vsel %vm236, %v237, %v228
        %v239 = vshrl.u32 %v238, 6
        %v240 = vand.u32 %v238, 63
        %v241 = vsub.s32 0, %v240
        %v242 = vsel %vm236, %v241, %v240
        %vm243 = vcmp.ne.s32.totalorder %v235, 0
        %vm244 = vcmp.ne.s32.totalorder %v242, 0
        %vm245 = vcmp.lt.s32.totalorder %v235, 0
        %vm246 = vcmp.lt.s32.totalorder %v242, 0
        %vm247 = vmand %vm245, %vm243
        %vm248 = vmand %vm246, %vm244
        %v249 = vadd.s32 %v235, 64
        %v250 = vadd.s32 %v242, 64
        %v251 = vsel %vm247, %v249, %v235
        %v252 = vsel %vm248, %v250, %v242
        %vm253 = vcmp.lt.s32.totalorder %v251, 0
        %v254 = vsub.s32 0, %v251
        %v255 = vsel %vm253, %v254, %v251
        %v256 = vshrl.u32 %v255, 3
        %v257 = vand.u32 %v255, 7
        %v258 = vsub.s32 0, %v257
        %v259 = vsel %vm253, %v258, %v257
        %vm260 = vcmp.lt.s32.totalorder %v252, 0
        %v261 = vsub.s32 0, %v252
        %v262 = vsel %vm260, %v261, %v252
        %v263 = vshrl.u32 %v262, 3
        %v264 = vand.u32 %v262, 7
        %v265 = vsub.s32 0, %v264
        %v266 = vsel %vm260, %v265, %v264
        %vm267 = vcmp.ne.s32.totalorder %v259, 0
        %vm268 = vcmp.ne.s32.totalorder %v266, 0
        %vm269 = vcmp.lt.s32.totalorder %v259, 0
        %vm270 = vcmp.lt.s32.totalorder %v266, 0
        %vm271 = vmand %vm269, %vm267
        %vm272 = vmand %vm270, %vm268
        %v273 = vadd.s32 %v259, 8
        %v274 = vadd.s32 %v266, 8
        %v275 = vsel %vm271, %v273, %v259
        %v276 = vsel %vm272, %v274, %v266
        %vm277 = vcmp.ge.s32.totalorder %v251, 8
        %vm278 = vcmp.ge.s32.totalorder %v252, 8
        %vm279 = vcmp.lt.s32.totalorder %v251, 56
        %vm280 = vcmp.lt.s32.totalorder %v252, 56
        %vm281 = vcmp.gt.s32.totalorder %v275, 0
        %vm282 = vcmp.gt.s32.totalorder %v276, 0
        %vm283 = vcmp.lt.s32.totalorder %v275, 7
        %vm284 = vcmp.lt.s32.totalorder %v276, 7
        %v285 = vld [vmem:[#allocation2 + $0x8] sm:$0xff]
        %v286 = vld [vmem:[#allocation2 + $0x10] sm:$0xff]
        %287 = vst [vmem:[#allocation3] sm:$0xff] %v285
        %288 = vst [vmem:[#allocation3 + $0x8] sm:$0xff] %v286
        %v289 = vld [vmem:[#allocation2 + $0x8] sm:$0xff]
        %v290 = vld [vmem:[#allocation2 + $0x10] sm:$0xff]
        %v291 = vld [vmem:[#allocation2 + $0x18] sm:$0xff]
        %295 = vrot.lane.b32.xlu0 %v289, 127
        %v296 = vpop.permute.xlu0 %295
        %297 = vrot.lane.b32.xlu0 %v290, 127
        %v298 = vpop.permute.xlu0 %297
        %299 = vrot.lane.b32.xlu0 %v291, 127
        %v300 = vpop.permute.xlu0 %299
        %vm301 = vcmask 1039360
        %v302 = vsel %vm301, %v296, %v298
        %v303 = vsel %vm301, %v298, %v300
        %v306 = vsel %vm283, %v302, 0.0
        %v307 = vsel %vm284, %v303, 0.0
        %308 = vst [vmem:[#allocation3 + $0x10] sm:$0xff] %v306
        %309 = vst [vmem:[#allocation3 + $0x18] sm:$0xff] %v307
        %v310 = vld [vmem:[#allocation2 + $0x20] sm:$0xff]
        %v311 = vld [vmem:[#allocation2 + $0x28] sm:$0xff]
        %v312 = vld [vmem:[#allocation2 + $0x30] sm:$0xff]
        %316 = vrot.lane.b32.xlu0 %v310, 1
        %v317 = vpop.permute.xlu0 %316
        %318 = vrot.lane.b32.xlu0 %v311, 1
        %v319 = vpop.permute.xlu0 %318
        %320 = vrot.lane.b32.xlu0 %v312, 1
        %v321 = vpop.permute.xlu0 %320
        %vm322 = vcmask 7168
        %v323 = vsel %vm322, %v317, %v319
        %v324 = vsel %vm322, %v319, %v321
        %v327 = vsel %vm281, %v323, 0.0
        %v328 = vsel %vm282, %v324, 0.0
        %329 = vst [vmem:[#allocation3 + $0x20] sm:$0xff] %v327
        %330 = vst [vmem:[#allocation3 + $0x28] sm:$0xff] %v328
        %v331 = vld [vmem:[#allocation2 + $0x28] sm:$0xff]
        %v332 = vld [vmem:[#allocation2 + $0x30] sm:$0xff]
        %333 = vst [vmem:[#allocation3 + $0x30] sm:$0xff] %v331
        %334 = vst [vmem:[#allocation3 + $0x38] sm:$0xff] %v332
        %v335 = vld [vmem:[#allocation2 + $0x8] sm:$0xff]
        %v336 = vld [vmem:[#allocation2 + $0x10] sm:$0xff]
        %v337 = vld [vmem:[#allocation2 + $0x18] sm:$0xff]
        %341 = vrot.lane.b32.xlu0 %v335, 120
        %v342 = vpop.permute.xlu0 %341
        %343 = vrot.lane.b32.xlu0 %v336, 120
        %v344 = vpop.permute.xlu0 %343
        %345 = vrot.lane.b32.xlu0 %v337, 120
        %v346 = vpop.permute.xlu0 %345
        %vm347 = vcmask 982016
        %v348 = vsel %vm347, %v342, %v344
        %v349 = vsel %vm347, %v344, %v346
        %v352 = vsel %vm279, %v348, 0.0
        %v353 = vsel %vm280, %v349, 0.0
        %354 = vst [vmem:[#allocation3 + $0x40] sm:$0xff] %v352
        %355 = vst [vmem:[#allocation3 + $0x48] sm:$0xff] %v353
        %v356 = vld [vmem:[#allocation2 + $0x8] sm:$0xff]
        %v357 = vld [vmem:[#allocation2 + $0x10] sm:$0xff]
        %v358 = vld [vmem:[#allocation2 + $0x18] sm:$0xff]
        %vm359 = vmand %vm279, %vm283
        %vm360 = vmand %vm280, %vm284
        %364 = vrot.lane.b32.xlu0 %v356, 119
        %v365 = vpop.permute.xlu0 %364
        %366 = vrot.lane.b32.xlu0 %v357, 119
        %v367 = vpop.permute.xlu0 %366
        %368 = vrot.lane.b32.xlu0 %v358, 119
        %v369 = vpop.permute.xlu0 %368
        %vm370 = vcmask 973824
        %v371 = vsel %vm370, %v365, %v367
        %v372 = vsel %vm370, %v367, %v369
        %v375 = vsel %vm359, %v371, 0.0
        %v376 = vsel %vm360, %v372, 0.0
        %377 = vst [vmem:[#allocation3 + $0x50] sm:$0xff] %v375
        %378 = vst [vmem:[#allocation3 + $0x58] sm:$0xff] %v376
        %v379 = vld [vmem:[#allocation2 + $0x28] sm:$0xff]
        %v380 = vld [vmem:[#allocation2 + $0x30] sm:$0xff]
        %v381 = vld [vmem:[#allocation2 + $0x38] sm:$0xff]
        %vm382 = vmand %vm279, %vm281
        %vm383 = vmand %vm280, %vm282
        %387 = vrot.lane.b32.xlu0 %v379, 121
        %v388 = vpop.permute.xlu0 %387
        %389 = vrot.lane.b32.xlu0 %v380, 121
        %v390 = vpop.permute.xlu0 %389
        %391 = vrot.lane.b32.xlu0 %v381, 121
        %v392 = vpop.permute.xlu0 %391
        %vm393 = vcmask 990208
        %v394 = vsel %vm393, %v388, %v390
        %v395 = vsel %vm393, %v390, %v392
        %v398 = vsel %vm382, %v394, 0.0
        %v399 = vsel %vm383, %v395, 0.0
        %400 = vst [vmem:[#allocation3 + $0x60] sm:$0xff] %v398
        %401 = vst [vmem:[#allocation3 + $0x68] sm:$0xff] %v399
        %v402 = vld [vmem:[#allocation2 + $0x28] sm:$0xff]
        %v403 = vld [vmem:[#allocation2 + $0x30] sm:$0xff]
        %v404 = vld [vmem:[#allocation2 + $0x38] sm:$0xff]
        %408 = vrot.lane.b32.xlu0 %v402, 120
        %v409 = vpop.permute.xlu0 %408
        %410 = vrot.lane.b32.xlu0 %v403, 120
        %v411 = vpop.permute.xlu0 %410
        %412 = vrot.lane.b32.xlu0 %v404, 120
        %v413 = vpop.permute.xlu0 %412
        %v414 = vsel %vm347, %v409, %v411
        %v415 = vsel %vm347, %v411, %v413
        %v418 = vsel %vm279, %v414, 0.0
        %v419 = vsel %vm280, %v415, 0.0
        %420 = vst [vmem:[#allocation3 + $0x70] sm:$0xff] %v418
        %421 = vst [vmem:[#allocation3 + $0x78] sm:$0xff] %v419
        %v422 = vld [vmem:[#allocation2 + $0x40] sm:$0xff]
        %v423 = vld [vmem:[#allocation2 + $0x48] sm:$0xff]
        %v424 = vld [vmem:[#allocation2 + $0x50] sm:$0xff]
        %428 = vrot.lane.b32.xlu0 %v422, 8
        %v429 = vpop.permute.xlu0 %428
        %430 = vrot.lane.b32.xlu0 %v423, 8
        %v431 = vpop.permute.xlu0 %430
        %432 = vrot.lane.b32.xlu0 %v424, 8
        %v433 = vpop.permute.xlu0 %432
        %vm434 = vcmask 64512
        %v435 = vsel %vm434, %v429, %v431
        %v436 = vsel %vm434, %v431, %v433
        %v439 = vsel %vm277, %v435, 0.0
        %v440 = vsel %vm278, %v436, 0.0
        %441 = vst [vmem:[#allocation3 + $0x80] sm:$0xff] %v439
        %442 = vst [vmem:[#allocation3 + $0x88] sm:$0xff] %v440
        %v443 = vld [vmem:[#allocation2 + $0x40] sm:$0xff]
        %v444 = vld [vmem:[#allocation2 + $0x48] sm:$0xff]
        %v445 = vld [vmem:[#allocation2 + $0x50] sm:$0xff]
        %vm446 = vmand %vm277, %vm283
        %vm447 = vmand %vm278, %vm284
        %451 = vrot.lane.b32.xlu0 %v443, 7
        %v452 = vpop.permute.xlu0 %451
        %453 = vrot.lane.b32.xlu0 %v444, 7
        %v454 = vpop.permute.xlu0 %453
        %455 = vrot.lane.b32.xlu0 %v445, 7
        %v456 = vpop.permute.xlu0 %455
        %vm457 = vcmask 56320
        %v458 = vsel %vm457, %v452, %v454
        %v459 = vsel %vm457, %v454, %v456
        %v462 = vsel %vm446, %v458, 0.0
        %v463 = vsel %vm447, %v459, 0.0
        %464 = vst [vmem:[#allocation3 + $0x90] sm:$0xff] %v462
        %465 = vst [vmem:[#allocation3 + $0x98] sm:$0xff] %v463
        %v466 = vld [vmem:[#allocation2 + $0x60] sm:$0xff]
        %v467 = vld [vmem:[#allocation2 + $0x68] sm:$0xff]
        %v468 = vld [vmem:[#allocation2 + $0x70] sm:$0xff]
        %vm469 = vmand %vm277, %vm281
        %vm470 = vmand %vm278, %vm282
        %474 = vrot.lane.b32.xlu0 %v466, 9
        %v475 = vpop.permute.xlu0 %474
        %476 = vrot.lane.b32.xlu0 %v467, 9
        %v477 = vpop.permute.xlu0 %476
        %478 = vrot.lane.b32.xlu0 %v468, 9
        %v479 = vpop.permute.xlu0 %478
        %vm480 = vcmask 72704
        %v481 = vsel %vm480, %v475, %v477
        %v482 = vsel %vm480, %v477, %v479
        %v485 = vsel %vm469, %v481, 0.0
        %v486 = vsel %vm470, %v482, 0.0
        %487 = vst [vmem:[#allocation3 + $0xa0] sm:$0xff] %v485
        %488 = vst [vmem:[#allocation3 + $0xa8] sm:$0xff] %v486
        %v489 = vld [vmem:[#allocation2 + $0x60] sm:$0xff]
        %v490 = vld [vmem:[#allocation2 + $0x68] sm:$0xff]
        %v491 = vld [vmem:[#allocation2 + $0x70] sm:$0xff]
        %495 = vrot.lane.b32.xlu0 %v489, 8
        %v496 = vpop.permute.xlu0 %495
        %497 = vrot.lane.b32.xlu0 %v490, 8
        %v498 = vpop.permute.xlu0 %497
        %499 = vrot.lane.b32.xlu0 %v491, 8
        %v500 = vpop.permute.xlu0 %499
        %v501 = vsel %vm434, %v496, %v498
        %v502 = vsel %vm434, %v498, %v500
        %v505 = vsel %vm277, %v501, 0.0
        %v506 = vsel %vm278, %v502, 0.0
        %507 = vst [vmem:[#allocation3 + $0xb0] sm:$0xff] %v505
        %508 = vst [vmem:[#allocation3 + $0xb8] sm:$0xff] %v506
        %v509 = vld [vmem:[#allocation2 + $0x48] sm:$0xff]
        %v510 = vld [vmem:[#allocation2 + $0x50] sm:$0xff]
        %511 = vst [vmem:[#allocation3 + $0xc0] sm:$0xff] %v509
        %512 = vst [vmem:[#allocation3 + $0xc8] sm:$0xff] %v510
        %v513 = vld [vmem:[#allocation2 + $0x48] sm:$0xff]
        %v514 = vld [vmem:[#allocation2 + $0x50] sm:$0xff]
        %v515 = vld [vmem:[#allocation2 + $0x58] sm:$0xff]
        %519 = vrot.lane.b32.xlu0 %v513, 127
        %v520 = vpop.permute.xlu0 %519
        %521 = vrot.lane.b32.xlu0 %v514, 127
        %v522 = vpop.permute.xlu0 %521
        %523 = vrot.lane.b32.xlu0 %v515, 127
        %v524 = vpop.permute.xlu0 %523
        %v525 = vsel %vm301, %v520, %v522
        %v526 = vsel %vm301, %v522, %v524
        %v529 = vsel %vm283, %v525, 0.0
        %v530 = vsel %vm284, %v526, 0.0
        %531 = vst [vmem:[#allocation3 + $0xd0] sm:$0xff] %v529
        %532 = vst [vmem:[#allocation3 + $0xd8] sm:$0xff] %v530
        %v533 = vld [vmem:[#allocation2 + $0x60] sm:$0xff]
        %v534 = vld [vmem:[#allocation2 + $0x68] sm:$0xff]
        %v535 = vld [vmem:[#allocation2 + $0x70] sm:$0xff]
        %539 = vrot.lane.b32.xlu0 %v533, 1
        %v540 = vpop.permute.xlu0 %539
        %541 = vrot.lane.b32.xlu0 %v534, 1
        %v542 = vpop.permute.xlu0 %541
        %543 = vrot.lane.b32.xlu0 %v535, 1
        %v544 = vpop.permute.xlu0 %543
        %v545 = vsel %vm322, %v540, %v542
        %v546 = vsel %vm322, %v542, %v544
        %v549 = vsel %vm281, %v545, 0.0
        %v550 = vsel %vm282, %v546, 0.0
        %551 = vst [vmem:[#allocation3 + $0xe0] sm:$0xff] %v549
        %552 = vst [vmem:[#allocation3 + $0xe8] sm:$0xff] %v550
        %v553 = vld [vmem:[#allocation2 + $0x68] sm:$0xff]
        %v554 = vld [vmem:[#allocation2 + $0x70] sm:$0xff]
        %555 = vst [vmem:[#allocation3 + $0xf0] sm:$0xff] %v553
        %556 = vst [vmem:[#allocation3 + $0xf8] sm:$0xff] %v554
        %v557 = vld [vmem:[#allocation7] sm:$0xff]
        %v558 = vld [vmem:[#allocation7 + $0x8] sm:$0xff]
        %v559 = vld [vmem:[#allocation7 + $0x10] sm:$0xff]
        %v560 = vld [vmem:[#allocation7 + $0x18] sm:$0xff]
        %v561 = vld [vmem:[#allocation3] sm:$0xff]
        %v562 = vld [vmem:[#allocation3 + $0x8] sm:$0xff]
        %v563 = vld [vmem:[#allocation3 + $0x10] sm:$0xff]
        %v564 = vld [vmem:[#allocation3 + $0x18] sm:$0xff]
        %v565 = vld [vmem:[#allocation3 + $0x20] sm:$0xff]
        %v566 = vld [vmem:[#allocation3 + $0x28] sm:$0xff]
        %v567 = vld [vmem:[#allocation3 + $0x30] sm:$0xff]
        %v568 = vld [vmem:[#allocation3 + $0x38] sm:$0xff]
        %v569 = vld [vmem:[#allocation3 + $0x40] sm:$0xff]
        %v570 = vld [vmem:[#allocation3 + $0x48] sm:$0xff]
        %v571 = vld [vmem:[#allocation3 + $0x50] sm:$0xff]
        %v572 = vld [vmem:[#allocation3 + $0x58] sm:$0xff]
        %v573 = vld [vmem:[#allocation3 + $0x60] sm:$0xff]
        %v574 = vld [vmem:[#allocation3 + $0x68] sm:$0xff]
        %v575 = vld [vmem:[#allocation3 + $0x70] sm:$0xff]
        %v576 = vld [vmem:[#allocation3 + $0x78] sm:$0xff]
        %v577 = vld [vmem:[#allocation3 + $0x80] sm:$0xff]
        %v578 = vld [vmem:[#allocation3 + $0x88] sm:$0xff]
        %v579 = vld [vmem:[#allocation3 + $0x90] sm:$0xff]
        %v580 = vld [vmem:[#allocation3 + $0x98] sm:$0xff]
        %v581 = vld [vmem:[#allocation3 + $0xa0] sm:$0xff]
        %v582 = vld [vmem:[#allocation3 + $0xa8] sm:$0xff]
        %v583 = vld [vmem:[#allocation3 + $0xb0] sm:$0xff]
        %v584 = vld [vmem:[#allocation3 + $0xb8] sm:$0xff]
        %v585 = vld [vmem:[#allocation3 + $0xc0] sm:$0xff]
        %v586 = vld [vmem:[#allocation3 + $0xc8] sm:$0xff]
        %v587 = vld [vmem:[#allocation3 + $0xd0] sm:$0xff]
        %v588 = vld [vmem:[#allocation3 + $0xd8] sm:$0xff]
        %v589 = vld [vmem:[#allocation3 + $0xe0] sm:$0xff]
        %v590 = vld [vmem:[#allocation3 + $0xe8] sm:$0xff]
        %v591 = vld [vmem:[#allocation3 + $0xf0] sm:$0xff]
        %v592 = vld [vmem:[#allocation3 + $0xf8] sm:$0xff]
        %593 = vmatpush.msra.mxu0 %v591
        %594 = vmatpush.msra.mxu0 %v589
        %595 = vmatpush.msra.mxu0 %v587
        %596 = vmatpush.msra.mxu0 %v585
        %597 = vmatpush.msra.mxu0 %v583
        %598 = vmatpush.msra.mxu0 %v581
        %599 = vmatpush.msra.mxu0 %v579
        %600 = vmatpush.msra.mxu0 %v577
        %601 = vmatpush.msra.mxu0 %v575
        %602 = vmatpush.msra.mxu0 %v573
        %603 = vmatpush.msra.mxu0 %v571
        %604 = vmatpush.msra.mxu0 %v569
        %605 = vmatpush.msra.mxu0 %v567
        %606 = vmatpush.msra.mxu0 %v565
        %607 = vmatpush.msra.mxu0 %v563
        %608 = vmatpush.msra.mxu0 %v561
        %609 = vmatmul.f32.gmra.mxu0 %v557
        %v610 = vpop.f32.mrf.mxu0
        %v611 = vadd.f32 0.0, %v610
        %612 = vmatmul.f32.gmra.mxu0 %v558
        %v613 = vpop.f32.mrf.mxu0
        %v614 = vadd.f32 0.0, %v613
        %615 = vmatmul.f32.gmra.mxu0 %v559
        %v616 = vpop.f32.mrf.mxu0
        %v617 = vadd.f32 0.0, %v616
        %618 = vmatmul.f32.gmra.mxu0 %v560
        %v619 = vpop.f32.mrf.mxu0
        %v620 = vadd.f32 0.0, %v619
        %621 = vdwg.mxu0
        %622 = vmatpush.msra.mxu0 %v592
        %623 = vmatpush.msra.mxu0 %v590
        %624 = vmatpush.msra.mxu0 %v588
        %625 = vmatpush.msra.mxu0 %v586
        %626 = vmatpush.msra.mxu0 %v584
        %627 = vmatpush.msra.mxu0 %v582
        %628 = vmatpush.msra.mxu0 %v580
        %629 = vmatpush.msra.mxu0 %v578
        %630 = vmatpush.msra.mxu0 %v576
        %631 = vmatpush.msra.mxu0 %v574
        %632 = vmatpush.msra.mxu0 %v572
        %633 = vmatpush.msra.mxu0 %v570
        %634 = vmatpush.msra.mxu0 %v568
        %635 = vmatpush.msra.mxu0 %v566
        %636 = vmatpush.msra.mxu0 %v564
        %637 = vmatpush.msra.mxu0 %v562
        %638 = vmatmul.f32.gmra.mxu0 %v557
        %v639 = vpop.f32.mrf.mxu0
        %v640 = vadd.f32 0.0, %v639
        %641 = vmatmul.f32.gmra.mxu0 %v558
        %v642 = vpop.f32.mrf.mxu0
        %v643 = vadd.f32 0.0, %v642
        %644 = vmatmul.f32.gmra.mxu0 %v559
        %v645 = vpop.f32.mrf.mxu0
        %v646 = vadd.f32 0.0, %v645
        %647 = vmatmul.f32.gmra.mxu0 %v560
        %v648 = vpop.f32.mrf.mxu0
        %v649 = vadd.f32 0.0, %v648
        %650 = vdwg.mxu0
        %v651 = vmax.f32 %v611, %v614
        %v652 = vmax.f32 %v640, %v643
        %v653 = vmax.f32 %v617, %v620
        %v654 = vmax.f32 %v646, %v649
        %v655 = vmax.f32 %v651, %v653
        %v656 = vmax.f32 %v652, %v654
        %v657 = vld [vmem:[%s2] sm:$0xff]
        %659 = vset.pattern.permute.xlu0 0
        %660 = vperm.xlu0 %659, %v657
        %v661 = vpop.permute.xlu0 %660
        %v663 = vadd.f32 %v655, %v661
        %v664 = vadd.f32 %v656, %v661
        %v665 = vmax.f32 %v663, 0.0
        %v666 = vmax.f32 %v664, 0.0
        %667 = vst [vmem:[%s207] sm:$0xff] %v665
        %668 = vst [vmem:[%s207 + $0x8] sm:$0xff] %v666
        %s669 = sand.u32 %s97, 1
        %s670 = scalar_lea.sflag [#allocation6], %s669
        %s671 = sand.u32 %s97, 1
        %s672 = smul.addr %s671, 16
        %s673 = scalar_lea.vmem [#allocation9], %s672
        // Predicated region
        $region41: #{tpu_custom_call.1} parent=31 // pred_check
          %p674 = pneg %p107
        $region42: #{tpu_custom_call.1} parent=31 // pred_check_branch
          %676 = sbr.rel (%p674) target = $region44
        $region43: #{tpu_custom_call.1} parent=31 // pred_region
          %s677 = smul.u32 2, %s21
          %679 = vsyncadd %s670, 0
          %s680 = smul.addr %s677, 8
          %s681 = scalar_lea.hbm %s3, %s680
          %s683 = sshll.u32 %s673, 4
          %s684 = int_to_ptr.vmem [resolvable:$true] %s683
          %s685 = sshll.u32 %s681, 4
          %s686 = int_to_ptr.hbm [resolvable:$true] %s685
          %688 = dma.vmem_to_hbm [thread:$0]  %s684, 256, %s686, %s670
        $region44: #{tpu_custom_call.1} parent=31 // pred_fallthru
          _
      $region32: #{tpu_custom_call.1} parent=5 // pred_fallthru
        _
      %p689 = scmp.le.s32.totalorder 2, %s16
      // Predicated region
      $region45: #{tpu_custom_call.1} parent=5 // pred_check
        %p690 = pneg %p689
      $region46: #{tpu_custom_call.1} parent=5 // pred_check_branch
        %692 = sbr.rel (%p690) target = $region48
      $region47: #{tpu_custom_call.1} parent=5 // pred_region
        %s693 = ssub.s32 %s16, 2
        // Predicated region
        $region49: #{tpu_custom_call.1} parent=47 // pred_check
          %p694 = pneg %p113
        $region50: #{tpu_custom_call.1} parent=47 // pred_check_branch
          %696 = sbr.rel (%p694) target = $region52
        $region51: #{tpu_custom_call.1} parent=47 // pred_region
          %s697 = sand.u32 %s98, 1
          %s698 = scalar_lea.sflag [#allocation6], %s697
          %s699 = sand.u32 %s98, 1
          %s700 = smul.addr %s699, 16
          %s701 = scalar_lea.vmem [#allocation9], %s700
          %703 = dma.done %s698, 256
        $region52: #{tpu_custom_call.1} parent=47 // pred_fallthru
          _
      $region48: #{tpu_custom_call.1} parent=5 // pred_fallthru
        _
    $region6: #{tpu_custom_call.1} parent=1 // loop_footer
      %s20 = sadd.s32 1, %s16
    $region7: #{tpu_custom_call.1} parent=1 // loop_footer_branch
      %15 = sbr.rel target = $region3
    $region8: #{tpu_custom_call.1} parent=1 // loop_exit
      _
    %704 = vsyncpa [#allocation5], 1
    %s705 = scalar_lea.sflag [#allocation5], 1
    %706 = vsyncpa %s705, 1
    %707 = vsyncpa [#allocation8], 1
    %708 = vsyncpa [#allocation6], 1
    %s709 = scalar_lea.sflag [#allocation6], 1
    %710 = vsyncpa %s709, 1

</llo_original>
